<compile_context>
chip_gen: v5e
topology: v5e:2x2
jax: 0.10.0
libtpu: 0.0.40
codegen_flags: <defaults>
</compile_context>

<pallas_src>
import functools

import jax
import jax.numpy as jnp
from jax.experimental import pallas as pl
from jax.experimental.pallas import tpu as pltpu


_TARGET_BLOCK_BYTES = 2 * 1024 * 1024  # ~2 MiB per block; 4 buffers ~= 8 MiB VMEM


def _choose_blocks(rows, lanes, itemsize):
    """Pick a (sublane, lane) block satisfying the (8,128) rule, ~2 MiB."""
    # Lane (last) dim: multiple of 128, or the full dim.
    if lanes % 128 == 0:
        lane_cap = max(128, (_TARGET_BLOCK_BYTES // (8 * itemsize)) // 128 * 128)
        bl = min(lanes, lane_cap)
    else:
        bl = lanes
    # Sublane (row) dim: multiple of 8, or the full dim.
    if rows % 8 == 0:
        row_cap = max(8, (_TARGET_BLOCK_BYTES // (bl * itemsize)) // 8 * 8)
        br = min(rows, row_cap)
    else:
        br = rows
    return br, bl


def _affine_kernel(x_ref, o_ref, *, scale, shift, out_lo, out_hi):
    """No-percentile path: one fused affine + one clamp."""
    x = x_ref[...].astype(jnp.float32)
    y = x * scale + shift
    y = jnp.minimum(jnp.maximum(y, out_lo), out_hi)
    o_ref[...] = y.astype(o_ref.dtype)


def _affine_clip_kernel(lo_ref, hi_ref, x_ref, o_ref, *, scale, shift):
    """Percentile path: bounds were pre-folded with the output range in glue."""
    x = x_ref[...].astype(jnp.float32)
    y = x * scale + shift
    # lo_ref/hi_ref are (block_rows, 1); broadcast along the lane dim.
    y = jnp.minimum(jnp.maximum(y, lo_ref[...]), hi_ref[...])
    o_ref[...] = y.astype(o_ref.dtype)


def microscopy_normalize(x,
                         input_range=(0.0, 65535.0),
                         output_range=(0.0, 1.0),
                         clip_percentile=None):
    """JAX/Pallas equivalent of MicroscopyNormalize.forward.

    Accepts (C, H, W) or (B, C, H, W). Output dtype == input dtype.
    """
    squeeze_batch = x.ndim == 3
    if squeeze_batch:
        x = x[None]
    assert x.ndim == 4, "expected (C,H,W) or (B,C,H,W)"
    B, C, H, W = x.shape
    R, L = B * C, H * W
    x2d = x.reshape(R, L)                 # lane-dense view

    in_lo, in_hi = float(input_range[0]), float(input_range[1])
    out_lo, out_hi = float(output_range[0]), float(output_range[1])
    scale = (out_hi - out_lo) / (in_hi - in_lo)
    shift = out_lo - in_lo * scale

    br, bl = _choose_blocks(R, L, x2d.dtype.itemsize)
    grid = (pl.cdiv(R, br), pl.cdiv(L, bl))
    cparams = pltpu.CompilerParams(
        dimension_semantics=("parallel", "parallel"))

    if clip_percentile is None:
        kernel = functools.partial(_affine_kernel, scale=scale, shift=shift,
                                   out_lo=out_lo, out_hi=out_hi)
        out2d = pl.pallas_call(
            kernel,
            out_shape=jax.ShapeDtypeStruct((R, L), x2d.dtype),
            grid=grid,
            in_specs=[pl.BlockSpec((br, bl), lambda i, j: (i, j))],
            out_specs=pl.BlockSpec((br, bl), lambda i, j: (i, j)),
            compiler_params=cparams,
        )(x2d)
    else:
        low_p, high_p = clip_percentile
        # TODO(synk): sort-based per-channel quantile stays in plain JAX glue.
        lo = jnp.quantile(x2d, low_p / 100.0, axis=-1).astype(jnp.float32)
        hi = jnp.quantile(x2d, high_p / 100.0, axis=-1).astype(jnp.float32)
        # Fold (percentile clamp -> affine -> output clamp) into one clamp.
        # Exact for monotone (increasing) affines, i.e. the standard config.
        lo_t = jnp.minimum(jnp.maximum(lo * scale + shift, out_lo), out_hi)
        hi_t = jnp.minimum(jnp.maximum(hi * scale + shift, out_lo), out_hi)
        lo_t = lo_t.reshape(R, 1)
        hi_t = hi_t.reshape(R, 1)

        kernel = functools.partial(_affine_clip_kernel, scale=scale, shift=shift)
        out2d = pl.pallas_call(
            kernel,
            out_shape=jax.ShapeDtypeStruct((R, L), x2d.dtype),
            grid=grid,
            in_specs=[pl.BlockSpec((br, 1), lambda i, j: (i, 0)),
                      pl.BlockSpec((br, 1), lambda i, j: (i, 0)),
                      pl.BlockSpec((br, bl), lambda i, j: (i, j))],
            out_specs=pl.BlockSpec((br, bl), lambda i, j: (i, j)),
            compiler_params=cparams,
        )(lo_t, hi_t, x2d)

    out = out2d.reshape(B, C, H, W)
    if squeeze_batch:
        out = out[0]
    return out


def _reference(x, input_range, output_range, clip_percentile):
    """Pure-JAX reference mirroring the PyTorch forward (f32 math)."""
    xf = x.astype(jnp.float32)
    if clip_percentile is not None:
        low_p, high_p = clip_percentile
        B, C, H, W = xf.shape
        flat = xf.reshape(B, C, H * W)
        lo = jnp.quantile(flat, low_p / 100.0, axis=-1)[..., None, None]
        hi = jnp.quantile(flat, high_p / 100.0, axis=-1)[..., None, None]
        xf = jnp.clip(xf, lo, hi)
    xf = (xf - input_range[0]) / (input_range[1] - input_range[0])
    xf = xf * (output_range[1] - output_range[0]) + output_range[0]
    xf = jnp.clip(xf, output_range[0], output_range[1])
    return xf.astype(x.dtype)


if __name__ == "__main__":
    key = jax.random.PRNGKey(0)
    B, C, H, W = 2, 4, 16, 16
    # synthetic uint16-range microscopy image (as float, like torch float input)
    x = jax.random.uniform(key, (B, C, H, W), dtype=jnp.float32,
                           minval=0.0, maxval=65535.0)

    # default config (no percentile clipping)
    y = microscopy_normalize(x)
    jax.block_until_ready(y)
    y_ref = _reference(x, (0.0, 65535.0), (0.0, 1.0), None)
    assert y.dtype == x.dtype
    assert jnp.allclose(y, y_ref, atol=1e-6), "mismatch (no clip)"

    # with percentile clipping
    clip = (1.0, 99.0)
    y2 = microscopy_normalize(x, clip_percentile=clip)
    jax.block_until_ready(y2)
    y2_ref = _reference(x, (0.0, 65535.0), (0.0, 1.0), clip)
    assert jnp.allclose(y2, y2_ref, atol=1e-5), "mismatch (clip)"

    # 3-D (C, H, W) path with clipping
    y3 = microscopy_normalize(x[0], clip_percentile=clip)
    jax.block_until_ready(y3)
    assert jnp.allclose(y3, y2_ref[0], atol=1e-5), "mismatch (3D clip)"

    # bf16 input -> bf16 output (dtype is preserved)
    xb = x.astype(jnp.bfloat16)
    yb = microscopy_normalize(xb)
    jax.block_until_ready(yb)
    yb_ref = _reference(xb, (0.0, 65535.0), (0.0, 1.0), None)
    assert yb.dtype == jnp.bfloat16
    assert jnp.allclose(yb.astype(jnp.float32), yb_ref.astype(jnp.float32),
                        atol=1e-2), "mismatch (bf16)"

    print("KERNEL_OK")
</pallas_src>

<mosaic_0001>
module attributes {stable_mosaic.version = 11 : i64} {
  func.func @_affine_kernel(%arg0: i32, %arg1: i32, %arg2: memref<8x256xf32, #tpu.memory_space<vmem>>, %arg3: memref<8x256xf32, #tpu.memory_space<vmem>>) attributes {dimension_semantics = [#tpu.dimension_semantics<parallel>, #tpu.dimension_semantics<parallel>], iteration_bounds = array<i64: 1, 1>, scalar_prefetch = 0 : i64, scratch_operands = 0 : i64, tpu.core_type = #tpu.core_type<tc>, window_params = [{transform_indices = @transform_0, window_bounds = array<i64: 8, 256>}, {transform_indices = @transform_1, window_bounds = array<i64: 8, 256>}]} {
    %c0 = arith.constant 0 : index
    %c0_0 = arith.constant 0 : index
    %0 = vector.load %arg2[%c0, %c0_0] : memref<8x256xf32, #tpu.memory_space<vmem>>, vector<8x256xf32>
    %cst = arith.constant 1.52590219E-5 : f32
    %1 = vector.broadcast %cst : f32 to vector<8x256xf32>
    %2 = arith.mulf %0, %1 : vector<8x256xf32>
    %cst_1 = arith.constant 0.000000e+00 : f32
    %3 = vector.broadcast %cst_1 : f32 to vector<8x256xf32>
    %4 = arith.addf %2, %3 : vector<8x256xf32>
    %cst_2 = arith.constant 0.000000e+00 : f32
    %5 = vector.broadcast %cst_2 : f32 to vector<8x256xf32>
    %6 = arith.maximumf %4, %5 : vector<8x256xf32>
    %cst_3 = arith.constant 1.000000e+00 : f32
    %7 = vector.broadcast %cst_3 : f32 to vector<8x256xf32>
    %8 = arith.minimumf %6, %7 : vector<8x256xf32>
    %c0_4 = arith.constant 0 : index
    %c0_5 = arith.constant 0 : index
    %9 = vector.load %arg3[%c0_4, %c0_5] : memref<8x256xf32, #tpu.memory_space<vmem>>, vector<8x256xf32>
    tpu.vector_store %arg3[%c0_4, %c0_5], %8 {strides = array<i32>} : memref<8x256xf32, #tpu.memory_space<vmem>>, vector<8x256xf32>,
    return
  }
  func.func @transform_0(%arg0: i32, %arg1: i32) -> (i32, i32) {
    %c0_i32 = arith.constant 0 : i32
    return %arg0, %arg1 : i32, i32
  }
  func.func @transform_1(%arg0: i32, %arg1: i32) -> (i32, i32) {
    %c0_i32 = arith.constant 0 : i32
    return %arg0, %arg1 : i32, i32
  }
}

</mosaic_0001>

<llo_original>
// kernel: tpu_custom_call.1
$region0: #{tpu_custom_call.1}
  #allocation0 [shape = 'u32[]', space=smem, size = 0x4, offset = 0x4, fixed_abs, tag = 'smem constant byte address 0x4 - core index']
  #allocation1 [shape = 'u32[72,128]{1,0:T(1,128)}', space=vmem, size = 0x9000, scoped, tag = 'internal scratch']
  %s0 = inlined_call_operand.hbm [shape: f32[8,256], index: 0, kind: input, shape index: {}]
  %s1 = inlined_call_operand.hbm [shape: f32[8,256], index: 1, kind: output, shape index: {}]
  %s2 = sld [smem:[#allocation0]]
  $region18: #{tpu_custom_call.1} parent=0
    _
  %s4 = ssub.s32 1, %s2
  %s5 = scalar_select 0, %s4, %s2
  $region1: #{tpu_custom_call.1} parent=0
    #allocation2 [shape = 'u8[8192]{0}', space=vmem, size = 0x2000, scoped, tag = 'input window, operand 0, single buffered']
    #allocation3 [shape = 's32[1]{0}', space=sflag, size = 0x4, scoped, tag = 'scoped memory for tpu_custom_call.1']
    #allocation4 [shape = 's32[1]{0}', space=sflag, size = 0x4, scoped, tag = 'scoped memory for tpu_custom_call.1']
    #allocation5 [shape = 'u8[8192]{0}', space=vmem, size = 0x2000, scoped, tag = 'output window, operand 0, single buffered']
    %6 = vsyncpa [#allocation3], 0
    %7 = vsyncpa [#allocation4], 0
    // Predicated region
    $region2: #{tpu_custom_call.1} parent=1 // pred_check
      _
    $region3: #{tpu_custom_call.1} parent=1 // pred_check_branch
      %9 = sbr.rel (0) target = $region5
    $region4: #{tpu_custom_call.1} parent=1 // pred_region
      %11 = vsyncadd [#allocation3], 0
      %s13 = sshll.u32 %s0, 4
      %s14 = int_to_ptr.hbm [resolvable:$true] %s13
      %s15 = sshll.u32 [#allocation2], 4
      %s16 = int_to_ptr.vmem [resolvable:$true] %s15
      %18 = dma.hbm_to_vmem [thread:$0]  %s14, 256, %s16, [#allocation3]
    $region5: #{tpu_custom_call.1} parent=1 // pred_fallthru
      _
    // Predicated region
    $region6: #{tpu_custom_call.1} parent=1 // pred_check
      _
    $region7: #{tpu_custom_call.1} parent=1 // pred_check_branch
      %20 = sbr.rel (0) target = $region9
    $region8: #{tpu_custom_call.1} parent=1 // pred_region
      %22 = dma.done [#allocation3], 256
    $region9: #{tpu_custom_call.1} parent=1 // pred_fallthru
      _
    %v23 = vld [vmem:[#allocation2] sm:$0xff]
    %v24 = vld [vmem:[#allocation2 + $0x8] sm:$0xff]
    %v25 = vmul.f32 %v23, 1.5259022e-05
    %v26 = vmul.f32 %v24, 1.5259022e-05
    %v27 = vadd.f32 %v25, 0.0
    %v28 = vadd.f32 %v26, 0.0
    %v29 = vmax.f32 %v27, 0.0
    %v30 = vmax.f32 %v28, 0.0
    %v31 = vmin.f32 %v29, 1.0
    %v32 = vmin.f32 %v30, 1.0
    %33 = vst [vmem:[#allocation5] sm:$0xff] %v31
    %34 = vst [vmem:[#allocation5 + $0x8] sm:$0xff] %v32
    // Predicated region
    $region10: #{tpu_custom_call.1} parent=1 // pred_check
      _
    $region11: #{tpu_custom_call.1} parent=1 // pred_check_branch
      %36 = sbr.rel (0) target = $region13
    $region12: #{tpu_custom_call.1} parent=1 // pred_region
      %38 = vsyncadd [#allocation4], 0
      %s40 = sshll.u32 [#allocation5], 4
      %s41 = int_to_ptr.vmem [resolvable:$true] %s40
      %s42 = sshll.u32 %s1, 4
      %s43 = int_to_ptr.hbm [resolvable:$true] %s42
      %45 = dma.vmem_to_hbm [thread:$0]  %s41, 256, %s43, [#allocation4]
    $region13: #{tpu_custom_call.1} parent=1 // pred_fallthru
      _
    // Predicated region
    $region14: #{tpu_custom_call.1} parent=1 // pred_check
      _
    $region15: #{tpu_custom_call.1} parent=1 // pred_check_branch
      %47 = sbr.rel (0) target = $region17
    $region16: #{tpu_custom_call.1} parent=1 // pred_region
      %49 = dma.done [#allocation4], 256
    $region17: #{tpu_custom_call.1} parent=1 // pred_fallthru
      _
    %50 = vsyncpa [#allocation3], 1
    %51 = vsyncpa [#allocation4], 1

</llo_original>
